<compile_context>
chip_gen: v7x
topology: tpu7x:2x2x1
jax: 0.10.0
libtpu: 0.0.40
codegen_flags: <defaults>
</compile_context>

<pallas_src>
import math
import numpy as np
import jax
import jax.numpy as jnp
from jax import lax
from jax.experimental import pallas as pl
from jax.experimental.pallas import tpu as pltpu


def _masked_attention_kernel(x_ref, bias_ref, wq_ref, bq_ref, wkv_ref, bkv_ref,
                             o_ref, kv_scratch):
    D = wq_ref.shape[-1]
    TQ = o_ref.shape[1]
    scale = jnp.float32(1.0 / math.sqrt(D))
    i = pl.program_id(1)

    # K/V projection once per batch: fused [E, 2D] matmul, f32 accumulation, stored
    # bf16 in a VMEM scratch that persists across the query-tile grid axis.
    @pl.when(i == 0)
    def _():
        kv = jnp.dot(x_ref[0], wkv_ref[...],
                     preferred_element_type=jnp.float32) + bkv_ref[...]
        kv_scratch[...] = kv.astype(kv_scratch.dtype)

    # Q projection only for this query tile (rows sliced on-chip from the resident
    # full-sequence x block).
    row0 = pl.multiple_of(i * TQ, TQ)
    xq = x_ref[0, pl.ds(row0, TQ), :]                       # (TQ, E) bf16
    q = jnp.dot(xq, wq_ref[...],
                preferred_element_type=jnp.float32) + bq_ref[...]   # (TQ, D) f32

    k = kv_scratch[:, :D]                                   # (S, D) bf16
    v = kv_scratch[:, D:]                                    # (S, D) bf16

    # Scores: contract last dims of q and k directly (no k.T materialization).
    scores = lax.dot_general(
        q.astype(jnp.bfloat16), k,
        dimension_numbers=(((1,), (1,)), ((), ())),
        preferred_element_type=jnp.float32)                  # (TQ, S)
    scores = scores * scale + bias_ref[0]                    # additive mask, (1, S) bcast

    # Numerically stable softmax in f32; approx reciprocal runs on the EUP slot.
    scores = scores - jnp.max(scores, axis=-1, keepdims=True)
    p = jnp.exp(scores)
    p = p * pl.reciprocal(jnp.sum(p, axis=-1, keepdims=True), approx=True)

    out = jnp.dot(p.astype(jnp.bfloat16), v,
                  preferred_element_type=jnp.float32)        # (TQ, D)
    o_ref[0] = out.astype(o_ref.dtype)


def _choose_q_tile(S):
    """Largest convenient query tile: full S for short sequences, else a multiple of 8."""
    if S <= 256:
        return S
    for t in (256, 128, 64, 32, 16, 8):
        if S % t == 0:
            return t
    return S


def masked_self_attention(x, mask, params, *, q_tile=None):
    """x: [B, S, E] f32, mask: [B, S] f32 (0/1).  Returns [B, S, D] f32."""
    wq, bq, wk, bk, wv, bv = params
    B, S, E = x.shape
    D = wq.shape[-1]

    if q_tile is None:
        q_tile = _choose_q_tile(S)
    num_q = S // q_tile

    # Fused K/V weight [E, 2D]; biases as lane-major rows.
    wkv = jnp.concatenate([wk, wv], axis=1)
    bkv = jnp.concatenate([bk, bv], axis=0).reshape(1, 2 * D).astype(jnp.float32)
    bq2 = bq.reshape(1, D).astype(jnp.float32)

    # Additive mask bias: 0 where mask==1, -1e9 where mask==0 (key-side padding mask).
    bias = ((mask.astype(jnp.float32) - 1.0) * 1e9).reshape(B, 1, S)

    # Feed the MXU bf16 operands; accumulation stays f32 inside the kernel.
    x_bf = x.astype(jnp.bfloat16)
    wq_bf = wq.astype(jnp.bfloat16)
    wkv_bf = wkv.astype(jnp.bfloat16)

    grid = (B, num_q)

    flops = B * (2 * S * E * (2 * D)      # fused K/V projection (once per batch)
                 + 2 * S * E * D          # Q projection (summed over tiles)
                 + 2 * S * S * D          # q @ k^T
                 + 2 * S * S * D)         # p @ v
    cost = pl.CostEstimate(
        flops=flops,
        transcendentals=B * S * S,        # exp in softmax
        bytes_accessed=(x_bf.size * 2                   # x streamed once
                        + bias.size * 4
                        + (wq_bf.size + wkv_bf.size) * 2
                        + (bq2.size + bkv.size) * 4
                        + B * S * D * 4))

    return pl.pallas_call(
        _masked_attention_kernel,
        out_shape=jax.ShapeDtypeStruct((B, S, D), jnp.float32),
        grid_spec=pltpu.PrefetchScalarGridSpec(
            num_scalar_prefetch=0,
            grid=grid,
            in_specs=[
                pl.BlockSpec((1, S, E), lambda b, i: (b, 0, 0)),       # x: full seq, once/batch
                pl.BlockSpec((1, 1, S), lambda b, i: (b, 0, 0)),       # additive mask bias
                pl.BlockSpec((E, D), lambda b, i: (0, 0)),             # Wq (VMEM-resident)
                pl.BlockSpec((1, D), lambda b, i: (0, 0)),             # bq
                pl.BlockSpec((E, 2 * D), lambda b, i: (0, 0)),         # Wkv (VMEM-resident)
                pl.BlockSpec((1, 2 * D), lambda b, i: (0, 0)),         # bkv
            ],
            out_specs=pl.BlockSpec((1, q_tile, D), lambda b, i: (b, i, 0)),
            scratch_shapes=[pltpu.VMEM((S, 2 * D), jnp.bfloat16)],     # persistent K/V
        ),
        compiler_params=pltpu.CompilerParams(
            # Batch axis is independent (megacore-shardable); the q-tile axis carries
            # the persistent K/V scratch, so it must stay in-order.
            dimension_semantics=("parallel", "arbitrary"),
            vmem_limit_bytes=32 * 1024 * 1024,  # safe on v5e/v6e/v7x for these tiles
        ),
        cost_estimate=cost,
    )(x_bf, bias, wq_bf, bq2, wkv_bf, bkv)


def init_params(key, embedding_dimension, head_dimension):
    """Deterministic init mimicking torch.nn.Linear (uniform(-1/sqrt(fan_in), ...))."""
    E, D = embedding_dimension, head_dimension
    ks = jax.random.split(key, 6)
    lim = 1.0 / math.sqrt(E)
    wq = jax.random.uniform(ks[0], (E, D), jnp.float32, -lim, lim)
    bq = jax.random.uniform(ks[1], (D,), jnp.float32, -lim, lim)
    wk = jax.random.uniform(ks[2], (E, D), jnp.float32, -lim, lim)
    bk = jax.random.uniform(ks[3], (D,), jnp.float32, -lim, lim)
    wv = jax.random.uniform(ks[4], (E, D), jnp.float32, -lim, lim)
    bv = jax.random.uniform(ks[5], (D,), jnp.float32, -lim, lim)
    return (wq, bq, wk, bk, wv, bv)


def reference(x, mask, params):
    """Pure-JAX f32 reference mirroring the PyTorch forward exactly."""
    wq, bq, wk, bk, wv, bv = params
    B, S, E = x.shape
    D = wq.shape[-1]
    q = x @ wq + bq
    k = x @ wk + bk
    v = x @ wv + bv
    aw = jnp.einsum("bqd,bkd->bqk", q, k) / np.sqrt(D)
    mask3 = mask.reshape(B, 1, S)
    aw = jnp.where(mask3 == 0, -1e9, aw)
    p = jax.nn.softmax(aw, axis=-1)
    return jnp.einsum("bqk,bkd->bqd", p, v)


if __name__ == "__main__":
    # embedding_dimension=32, head_dimension=8, batch=2, seq=8
    B, S, E, D = 2, 8, 32, 8

    key = jax.random.PRNGKey(0)
    kx, km, kp = jax.random.split(key, 3)
    x = jax.random.normal(kx, (B, S, E), dtype=jnp.float32)
    # 0/1 key-padding mask, at least one valid position per row guaranteed.
    mask = (jax.random.uniform(km, (B, S)) > 0.3).astype(jnp.float32)
    mask = mask.at[:, 0].set(1.0)

    params = init_params(kp, E, D)

    out = masked_self_attention(x, mask, params)
    out = jax.block_until_ready(out)

    ref = reference(x, mask, params)
    assert out.shape == (B, S, D)
    # Tolerance reflects bf16 MXU operands + approx reciprocal (softmax/accum in f32).
    np.testing.assert_allclose(np.asarray(out), np.asarray(ref), rtol=3e-2, atol=3e-2)

    print("KERNEL_OK")
</pallas_src>

<mosaic_0001>
module attributes {stable_mosaic.version = 11 : i64} {
  func.func @_masked_attention_kernel(%arg0: i32, %arg1: i32, %arg2: memref<1x8x32xbf16, #tpu.memory_space<vmem>>, %arg3: memref<1x1x8xf32, #tpu.memory_space<vmem>>, %arg4: memref<32x8xbf16, #tpu.memory_space<vmem>>, %arg5: memref<1x8xf32, #tpu.memory_space<vmem>>, %arg6: memref<32x16xbf16, #tpu.memory_space<vmem>>, %arg7: memref<1x16xf32, #tpu.memory_space<vmem>>, %arg8: memref<1x8x8xf32, #tpu.memory_space<vmem>>, %arg9: memref<8x16xbf16, #tpu.memory_space<vmem>>) attributes {dimension_semantics = [#tpu.dimension_semantics<parallel>, #tpu.dimension_semantics<arbitrary>], iteration_bounds = array<i64: 2, 1>, scalar_prefetch = 0 : i64, scratch_operands = 1 : i64, tpu.core_type = #tpu.core_type<tc>, window_params = [{transform_indices = @transform_0, window_bounds = array<i64: 1, 8, 32>}, {transform_indices = @transform_1, window_bounds = array<i64: 1, 1, 8>}, {pipeline_mode = #tpu.pipeline_mode<synchronous>, transform_indices = @transform_2, window_bounds = array<i64: 32, 8>}, {pipeline_mode = #tpu.pipeline_mode<synchronous>, transform_indices = @transform_3, window_bounds = array<i64: 1, 8>}, {pipeline_mode = #tpu.pipeline_mode<synchronous>, transform_indices = @transform_4, window_bounds = array<i64: 32, 16>}, {pipeline_mode = #tpu.pipeline_mode<synchronous>, transform_indices = @transform_5, window_bounds = array<i64: 1, 16>}, {transform_indices = @transform_6, window_bounds = array<i64: 1, 8, 8>}]} {
    %c0_i32 = arith.constant 0 : i32
    %0 = arith.cmpi eq, %arg1, %c0_i32 : i32
    %1 = arith.extui %0 : i1 to i32
    %c0_i32_0 = arith.constant 0 : i32
    %2 = arith.cmpi ne, %1, %c0_i32_0 : i32
    scf.if %2 {
      %c0_20 = arith.constant 0 : index
      %c0_21 = arith.constant 0 : index
      %c0_22 = arith.constant 0 : index
      %38 = vector.load %arg2[%c0_20, %c0_21, %c0_22] : memref<1x8x32xbf16, #tpu.memory_space<vmem>>, vector<1x8x32xbf16>
      %39 = vector.shape_cast %38 : vector<1x8x32xbf16> to vector<8x32xbf16>
      %c0_23 = arith.constant 0 : index
      %c0_24 = arith.constant 0 : index
      %40 = vector.load %arg6[%c0_23, %c0_24] : memref<32x16xbf16, #tpu.memory_space<vmem>>, vector<32x16xbf16>
      %cst_25 = arith.constant dense<0.000000e+00> : vector<8x16xf32>
      %41 = tpu.matmul %39, %40, %cst_25 {dimension_numbers = #tpu.dot_dimension_numbers<[1], [0], [0], [1], [0, 0, 1, 1], [], []>} : vector<8x32xbf16>, vector<32x16xbf16>, vector<8x16xf32> -> vector<8x16xf32>
      %c0_26 = arith.constant 0 : index
      %c0_27 = arith.constant 0 : index
      %42 = vector.load %arg7[%c0_26, %c0_27] : memref<1x16xf32, #tpu.memory_space<vmem>>, vector<1x16xf32>
      %43 = vector.broadcast %42 : vector<1x16xf32> to vector<8x16xf32>
      %44 = arith.addf %41, %43 : vector<8x16xf32>
      %45 = arith.truncf %44 : vector<8x16xf32> to vector<8x16xbf16>
      %c0_28 = arith.constant 0 : index
      %c0_29 = arith.constant 0 : index
      %46 = vector.load %arg9[%c0_28, %c0_29] : memref<8x16xbf16, #tpu.memory_space<vmem>>, vector<8x16xbf16>
      tpu.vector_store %arg9[%c0_28, %c0_29], %45 {strides = array<i32>} : memref<8x16xbf16, #tpu.memory_space<vmem>>, vector<8x16xbf16>,
    } else {
    }
    %c8_i32 = arith.constant 8 : i32
    %3 = arith.muli %arg1, %c8_i32 : i32
    %4 = tpu.assume_multiple %3, 8 : i32
    %c0 = arith.constant 0 : index
    %5 = arith.index_cast %4 : i32 to index
    %c0_1 = arith.constant 0 : index
    %6 = vector.load %arg2[%c0, %5, %c0_1] : memref<1x8x32xbf16, #tpu.memory_space<vmem>>, vector<1x8x32xbf16>
    %7 = vector.shape_cast %6 : vector<1x8x32xbf16> to vector<8x32xbf16>
    %c0_2 = arith.constant 0 : index
    %c0_3 = arith.constant 0 : index
    %8 = vector.load %arg4[%c0_2, %c0_3] : memref<32x8xbf16, #tpu.memory_space<vmem>>, vector<32x8xbf16>
    %cst = arith.constant dense<0.000000e+00> : vector<8x8xf32>
    %9 = tpu.matmul %7, %8, %cst {dimension_numbers = #tpu.dot_dimension_numbers<[1], [0], [0], [1], [0, 0, 1, 1], [], []>} : vector<8x32xbf16>, vector<32x8xbf16>, vector<8x8xf32> -> vector<8x8xf32>
    %c0_4 = arith.constant 0 : index
    %c0_5 = arith.constant 0 : index
    %10 = vector.load %arg5[%c0_4, %c0_5] : memref<1x8xf32, #tpu.memory_space<vmem>>, vector<1x8xf32>
    %11 = vector.broadcast %10 : vector<1x8xf32> to vector<8x8xf32>
    %12 = arith.addf %9, %11 : vector<8x8xf32>
    %c0_6 = arith.constant 0 : index
    %c0_7 = arith.constant 0 : index
    %13 = vector.load %arg9[%c0_6, %c0_7] : memref<8x16xbf16, #tpu.memory_space<vmem>>, vector<8x8xbf16>
    %c0_8 = arith.constant 0 : index
    %c8 = arith.constant 8 : index
    %14 = vector.load %arg9[%c0_8, %c8] : memref<8x16xbf16, #tpu.memory_space<vmem>>, vector<8x8xbf16>
    %15 = arith.truncf %12 : vector<8x8xf32> to vector<8x8xbf16>
    %cst_9 = arith.constant dense<0.000000e+00> : vector<8x8xf32>
    %16 = tpu.matmul %15, %13, %cst_9 {dimension_numbers = #tpu.dot_dimension_numbers<[1], [1], [0], [0], [0, 0, 1, 0], [], []>} : vector<8x8xbf16>, vector<8x8xbf16>, vector<8x8xf32> -> vector<8x8xf32>
    %cst_10 = arith.constant 0.353553385 : f32
    %17 = vector.broadcast %cst_10 : f32 to vector<8x8xf32>
    %18 = arith.mulf %16, %17 : vector<8x8xf32>
    %c0_11 = arith.constant 0 : index
    %c0_12 = arith.constant 0 : index
    %c0_13 = arith.constant 0 : index
    %19 = vector.load %arg3[%c0_11, %c0_12, %c0_13] : memref<1x1x8xf32, #tpu.memory_space<vmem>>, vector<1x1x8xf32>
    %20 = vector.shape_cast %19 : vector<1x1x8xf32> to vector<1x8xf32>
    %21 = vector.broadcast %20 : vector<1x8xf32> to vector<8x8xf32>
    %22 = arith.addf %18, %21 : vector<8x8xf32>
    %cst_14 = arith.constant dense<0xFF800000> : vector<8xf32>
    %23 = vector.multi_reduction <maximumf>, %22, %cst_14 [1] : vector<8x8xf32> to vector<8xf32>
    %24 = vector.shape_cast %23 : vector<8xf32> to vector<8x1xf32>
    %25 = vector.broadcast %24 : vector<8x1xf32> to vector<8x8xf32>
    %26 = arith.subf %22, %25 : vector<8x8xf32>
    %27 = math.exp %26 : vector<8x8xf32>
    %cst_15 = arith.constant dense<0.000000e+00> : vector<8xf32>
    %28 = vector.multi_reduction <add>, %27, %cst_15 [1] : vector<8x8xf32> to vector<8xf32>
    %29 = vector.shape_cast %28 : vector<8xf32> to vector<8x1xf32>
    %30 = tpu.reciprocal %29 {approx = true} : vector<8x1xf32> -> vector<8x1xf32>
    %31 = vector.broadcast %30 : vector<8x1xf32> to vector<8x8xf32>
    %32 = arith.mulf %27, %31 : vector<8x8xf32>
    %33 = arith.truncf %32 : vector<8x8xf32> to vector<8x8xbf16>
    %cst_16 = arith.constant dense<0.000000e+00> : vector<8x8xf32>
    %34 = tpu.matmul %33, %14, %cst_16 {dimension_numbers = #tpu.dot_dimension_numbers<[1], [0], [0], [1], [0, 0, 1, 1], [], []>} : vector<8x8xbf16>, vector<8x8xbf16>, vector<8x8xf32> -> vector<8x8xf32>
    %c0_17 = arith.constant 0 : index
    %c0_18 = arith.constant 0 : index
    %c0_19 = arith.constant 0 : index
    %35 = vector.load %arg8[%c0_17, %c0_18, %c0_19] : memref<1x8x8xf32, #tpu.memory_space<vmem>>, vector<1x8x8xf32>
    %36 = vector.shape_cast %35 : vector<1x8x8xf32> to vector<8x8xf32>
    %37 = vector.shape_cast %34 : vector<8x8xf32> to vector<1x8x8xf32>
    tpu.vector_store %arg8[%c0_17, %c0_18, %c0_19], %37 {strides = array<i32>} : memref<1x8x8xf32, #tpu.memory_space<vmem>>, vector<1x8x8xf32>,
    return
  }
  func.func @transform_0(%arg0: i32, %arg1: i32) -> (i32, i32, i32) {
    %c0_i32 = arith.constant 0 : i32
    %c0_i32_0 = arith.constant 0 : i32
    %c0_i32_1 = arith.constant 0 : i32
    return %arg0, %c0_i32, %c0_i32_0 : i32, i32, i32
  }
  func.func @transform_1(%arg0: i32, %arg1: i32) -> (i32, i32, i32) {
    %c0_i32 = arith.constant 0 : i32
    %c0_i32_0 = arith.constant 0 : i32
    %c0_i32_1 = arith.constant 0 : i32
    return %arg0, %c0_i32, %c0_i32_0 : i32, i32, i32
  }
  func.func @transform_2(%arg0: i32, %arg1: i32) -> (i32, i32) {
    %c0_i32 = arith.constant 0 : i32
    %c0_i32_0 = arith.constant 0 : i32
    %c0_i32_1 = arith.constant 0 : i32
    return %c0_i32, %c0_i32_0 : i32, i32
  }
  func.func @transform_3(%arg0: i32, %arg1: i32) -> (i32, i32) {
    %c0_i32 = arith.constant 0 : i32
    %c0_i32_0 = arith.constant 0 : i32
    %c0_i32_1 = arith.constant 0 : i32
    return %c0_i32, %c0_i32_0 : i32, i32
  }
  func.func @transform_4(%arg0: i32, %arg1: i32) -> (i32, i32) {
    %c0_i32 = arith.constant 0 : i32
    %c0_i32_0 = arith.constant 0 : i32
    %c0_i32_1 = arith.constant 0 : i32
    return %c0_i32, %c0_i32_0 : i32, i32
  }
  func.func @transform_5(%arg0: i32, %arg1: i32) -> (i32, i32) {
    %c0_i32 = arith.constant 0 : i32
    %c0_i32_0 = arith.constant 0 : i32
    %c0_i32_1 = arith.constant 0 : i32
    return %c0_i32, %c0_i32_0 : i32, i32
  }
  func.func @transform_6(%arg0: i32, %arg1: i32) -> (i32, i32, i32) {
    %c0_i32 = arith.constant 0 : i32
    %c0_i32_0 = arith.constant 0 : i32
    return %arg0, %arg1, %c0_i32 : i32, i32, i32
  }
}

</mosaic_0001>

<llo_original>
// kernel: tpu_custom_call.1
$region0: #{tpu_custom_call.1}
  #allocation0 [shape = 'u32[]', space=smem, size = 0x4, offset = 0x4, fixed_abs, tag = 'smem constant byte address 0x4 - core index']
  #allocation1 [shape = 'u32[144,128]{1,0:T(1,128)}', space=vmem, size = 0x12000, scoped, tag = 'internal scratch']
  #allocation2 [shape = 'bf16[8,16]{1,0:T(8,128)(2,1)}', space=vmem, size = 0x800, scoped, tag = 'scratch operand']
  %s0 = inlined_call_operand.vmem [shape: bf16[2,8,32], index: 0, kind: input, shape index: {}]
  %s1 = inlined_call_operand.vmem [shape: f32[2,1,8], index: 1, kind: input, shape index: {}]
  %s2 = inlined_call_operand.vmem [shape: bf16[32,8], index: 2, kind: input, shape index: {}]
  %s3 = inlined_call_operand.vmem [shape: f32[1,8], index: 3, kind: input, shape index: {}]
  %s4 = inlined_call_operand.vmem [shape: bf16[32,16], index: 4, kind: input, shape index: {}]
  %s5 = inlined_call_operand.vmem [shape: f32[1,16], index: 5, kind: input, shape index: {}]
  %s6 = inlined_call_operand.hbm [shape: f32[2,8,8], index: 6, kind: output, shape index: {}]
  %s7 = sld [smem:[#allocation0]]
  $region61: #{tpu_custom_call.1} parent=0
    _
  %s9 = ssub.s32 1, %s7
  %s10 = scalar_select 0, %s9, %s7
  $region1: #{tpu_custom_call.1} parent=0
    #allocation3 [shape = 'u8[8192]{0}', space=vmem, size = 0x2000, scoped, tag = 'output window, operand 0']
    #allocation4 [shape = 's32[2]{0}', space=sflag, size = 0x8, scoped, tag = 'scoped memory for tpu_custom_call.1']
    %11 = vsyncpa [#allocation4], 0
    %s12 = scalar_lea.sflag [#allocation4], 1
    %13 = vsyncpa %s12, 0
    loop: start=0, step=1, limit=4
    $region2: #{tpu_custom_call.1} parent=1 // loop_pre_header
      _
    $region3: #{tpu_custom_call.1} parent=1 // loop_header
      %s15 = sphi 0, %s19
      %p16 = scmp.ge.s32.totalorder %s15, 4
      %s22 = sphi 0, %s34
      %s23 = sphi 0, %s30
      %s24 = sphi 0, %s22
      %s25 = sphi 0, %s23
      %s26 = sphi 0, %s24
      %s27 = sphi 0, %s25
      %s37 = sphi 0, %s39
      %s40 = sphi 0, %s37
      %s41 = sphi 0, %s40
      %s57 = sphi 0, %s41
      %s63 = sphi 0, %s65
      %s66 = sphi 0, %s63
      %s67 = sphi 0, %s66
      %s83 = sphi 0, %s67
      %s87 = sphi 0, %s87
      %s89 = sphi 0, %s87
      %s90 = sphi 0, %s89
      %s104 = sphi 0, %s90
      %s108 = sphi 0, %s108
      %s110 = sphi 0, %s108
      %s111 = sphi 0, %s110
      %s125 = sphi 0, %s111
      %s129 = sphi 0, %s129
      %s131 = sphi 0, %s129
      %s132 = sphi 0, %s131
      %s146 = sphi 0, %s132
      %s150 = sphi 0, %s150
      %s152 = sphi 0, %s150
      %s153 = sphi 0, %s152
      %s167 = sphi 0, %s153
      %s175 = sphi 0, %s177
      %s178 = sphi 0, %s175
      %s179 = sphi 0, %s178
      %s195 = sphi 0, %s179
    $region4: #{tpu_custom_call.1} parent=1 // loop_header_branch
      %18 = sbr.rel (%p16) target = $region8
    $region5: #{tpu_custom_call.1} parent=1 // loop_body
      %s20 = ssub.s32 %s15, 1
      %s21 = ssub.s32 %s15, 2
      %s28 = sadd.s32 1, %s23
      %p29 = scmp.ge.s32.totalorder %s28, 1
      %s30 = scalar_select %p29, 0, %s28
      %s31 = sadd.s32 1, %s22
      %s32 = scalar_select %p29, %s31, %s22
      %p33 = scmp.ge.s32.totalorder %s32, 2
      %s34 = scalar_select %p33, 0, %s32
      %s35 = ssub.s32 %s22, %s34
      %p36 = scmp.eq.s32.totalorder %s35, 0
      %s38 = sadd.s32 %s37, 1
      %s39 = scalar_select %p36, %s37, %s38
      %p42 = pneg %p36
      %p43 = scmp.eq.s32.totalorder %s15, 1
      %p44 = por %p42, %p43
      %p45 = scmp.ne.s32.totalorder %s37, %s40
      %p46 = scmp.eq.s32.totalorder %s15, 0
      %p47 = por %p45, %p46
      %p48 = scmp.ne.s32.totalorder %s37, %s40
      %p49 = scmp.eq.s32.totalorder %s20, 1
      %p50 = por %p48, %p49
      %p51 = scmp.ne.s32.totalorder %s40, %s41
      %p52 = scmp.eq.s32.totalorder %s20, 0
      %p53 = por %p51, %p52
      %p54 = scmp.ne.s32.totalorder %s40, %s41
      %p55 = scmp.eq.s32.totalorder %s21, 1
      %p56 = por %p54, %p55
      %p58 = scmp.ne.s32.totalorder %s41, %s57
      %p59 = scmp.eq.s32.totalorder %s21, 0
      %p60 = por %p58, %p59
      %s61 = ssub.s32 %s22, %s34
      %p62 = scmp.eq.s32.totalorder %s61, 0
      %s64 = sadd.s32 %s63, 1
      %s65 = scalar_select %p62, %s63, %s64
      %p68 = pneg %p62
      %p69 = scmp.eq.s32.totalorder %s15, 1
      %p70 = por %p68, %p69
      %p71 = scmp.ne.s32.totalorder %s63, %s66
      %p72 = scmp.eq.s32.totalorder %s15, 0
      %p73 = por %p71, %p72
      %p74 = scmp.ne.s32.totalorder %s63, %s66
      %p75 = scmp.eq.s32.totalorder %s20, 1
      %p76 = por %p74, %p75
      %p77 = scmp.ne.s32.totalorder %s66, %s67
      %p78 = scmp.eq.s32.totalorder %s20, 0
      %p79 = por %p77, %p78
      %p80 = scmp.ne.s32.totalorder %s66, %s67
      %p81 = scmp.eq.s32.totalorder %s21, 1
      %p82 = por %p80, %p81
      %p84 = scmp.ne.s32.totalorder %s67, %s83
      %p85 = scmp.eq.s32.totalorder %s21, 0
      %p86 = por %p84, %p85
      %s88 = sadd.s32 %s87, 1
      %p91 = scmp.eq.s32.totalorder %s15, 1
      %p92 = scmp.ne.s32.totalorder %s87, %s89
      %p93 = scmp.eq.s32.totalorder %s15, 0
      %p94 = por %p92, %p93
      %p95 = scmp.ne.s32.totalorder %s87, %s89
      %p96 = scmp.eq.s32.totalorder %s20, 1
      %p97 = por %p95, %p96
      %p98 = scmp.ne.s32.totalorder %s89, %s90
      %p99 = scmp.eq.s32.totalorder %s20, 0
      %p100 = por %p98, %p99
      %p101 = scmp.ne.s32.totalorder %s89, %s90
      %p102 = scmp.eq.s32.totalorder %s21, 1
      %p103 = por %p101, %p102
      %p105 = scmp.ne.s32.totalorder %s90, %s104
      %p106 = scmp.eq.s32.totalorder %s21, 0
      %p107 = por %p105, %p106
      %s109 = sadd.s32 %s108, 1
      %p112 = scmp.eq.s32.totalorder %s15, 1
      %p113 = scmp.ne.s32.totalorder %s108, %s110
      %p114 = scmp.eq.s32.totalorder %s15, 0
      %p115 = por %p113, %p114
      %p116 = scmp.ne.s32.totalorder %s108, %s110
      %p117 = scmp.eq.s32.totalorder %s20, 1
      %p118 = por %p116, %p117
      %p119 = scmp.ne.s32.totalorder %s110, %s111
      %p120 = scmp.eq.s32.totalorder %s20, 0
      %p121 = por %p119, %p120
      %p122 = scmp.ne.s32.totalorder %s110, %s111
      %p123 = scmp.eq.s32.totalorder %s21, 1
      %p124 = por %p122, %p123
      %p126 = scmp.ne.s32.totalorder %s111, %s125
      %p127 = scmp.eq.s32.totalorder %s21, 0
      %p128 = por %p126, %p127
      %s130 = sadd.s32 %s129, 1
      %p133 = scmp.eq.s32.totalorder %s15, 1
      %p134 = scmp.ne.s32.totalorder %s129, %s131
      %p135 = scmp.eq.s32.totalorder %s15, 0
      %p136 = por %p134, %p135
      %p137 = scmp.ne.s32.totalorder %s129, %s131
      %p138 = scmp.eq.s32.totalorder %s20, 1
      %p139 = por %p137, %p138
      %p140 = scmp.ne.s32.totalorder %s131, %s132
      %p141 = scmp.eq.s32.totalorder %s20, 0
      %p142 = por %p140, %p141
      %p143 = scmp.ne.s32.totalorder %s131, %s132
      %p144 = scmp.eq.s32.totalorder %s21, 1
      %p145 = por %p143, %p144
      %p147 = scmp.ne.s32.totalorder %s132, %s146
      %p148 = scmp.eq.s32.totalorder %s21, 0
      %p149 = por %p147, %p148
      %s151 = sadd.s32 %s150, 1
      %p154 = scmp.eq.s32.totalorder %s15, 1
      %p155 = scmp.ne.s32.totalorder %s150, %s152
      %p156 = scmp.eq.s32.totalorder %s15, 0
      %p157 = por %p155, %p156
      %p158 = scmp.ne.s32.totalorder %s150, %s152
      %p159 = scmp.eq.s32.totalorder %s20, 1
      %p160 = por %p158, %p159
      %p161 = scmp.ne.s32.totalorder %s152, %s153
      %p162 = scmp.eq.s32.totalorder %s20, 0
      %p163 = por %p161, %p162
      %p164 = scmp.ne.s32.totalorder %s152, %s153
      %p165 = scmp.eq.s32.totalorder %s21, 1
      %p166 = por %p164, %p165
      %p168 = scmp.ne.s32.totalorder %s153, %s167
      %p169 = scmp.eq.s32.totalorder %s21, 0
      %p170 = por %p168, %p169
      %s171 = ssub.s32 %s22, %s34
      %s172 = ssub.s32 %s23, %s30
      %s173 = sor.u32 %s171, %s172
      %p174 = scmp.eq.s32.totalorder %s173, 0
      %s176 = sadd.s32 %s175, 1
      %s177 = scalar_select %p174, %s175, %s176
      %p180 = pneg %p174
      %p181 = scmp.eq.s32.totalorder %s15, 1
      %p182 = por %p180, %p181
      %p183 = scmp.ne.s32.totalorder %s175, %s178
      %p184 = scmp.eq.s32.totalorder %s15, 0
      %p185 = por %p183, %p184
      %p186 = scmp.ne.s32.totalorder %s175, %s178
      %p187 = scmp.eq.s32.totalorder %s20, 1
      %p188 = por %p186, %p187
      %p189 = scmp.ne.s32.totalorder %s178, %s179
      %p190 = scmp.eq.s32.totalorder %s20, 0
      %p191 = por %p189, %p190
      %p192 = scmp.ne.s32.totalorder %s178, %s179
      %p193 = scmp.eq.s32.totalorder %s21, 1
      %p194 = por %p192, %p193
      %p196 = scmp.ne.s32.totalorder %s179, %s195
      %p197 = scmp.eq.s32.totalorder %s21, 0
      %p198 = por %p196, %p197
      %p199 = scmp.le.s32.totalorder 1, %s15
      %p200 = scmp.lt.s32.totalorder %s15, 3
      %p201 = pnand %p199, %p200
      %p202 = pneg %p201
      // Predicated region
      $region9: #{tpu_custom_call.1} parent=5 // pred_check
        _
      $region10: #{tpu_custom_call.1} parent=5 // pred_check_branch
        %204 = sbr.rel (%p201) target = $region12
      $region11: #{tpu_custom_call.1} parent=5 // pred_region
        %s205 = ssub.s32 %s15, 1
        // Predicated region
        $region13: #{tpu_custom_call.1} parent=11 // pred_check
          %p206 = pneg %p100
        $region14: #{tpu_custom_call.1} parent=11 // pred_check_branch
          %208 = sbr.rel (%p206) target = $region16
        $region15: #{tpu_custom_call.1} parent=11 // pred_region
          _
        $region16: #{tpu_custom_call.1} parent=11 // pred_fallthru
          _
        // Predicated region
        $region17: #{tpu_custom_call.1} parent=11 // pred_check
          %p209 = pneg %p121
        $region18: #{tpu_custom_call.1} parent=11 // pred_check_branch
          %211 = sbr.rel (%p209) target = $region20
        $region19: #{tpu_custom_call.1} parent=11 // pred_region
          _
        $region20: #{tpu_custom_call.1} parent=11 // pred_fallthru
          _
        // Predicated region
        $region21: #{tpu_custom_call.1} parent=11 // pred_check
          %p212 = pneg %p142
        $region22: #{tpu_custom_call.1} parent=11 // pred_check_branch
          %214 = sbr.rel (%p212) target = $region24
        $region23: #{tpu_custom_call.1} parent=11 // pred_region
          _
        $region24: #{tpu_custom_call.1} parent=11 // pred_fallthru
          _
        // Predicated region
        $region25: #{tpu_custom_call.1} parent=11 // pred_check
          %p215 = pneg %p163
        $region26: #{tpu_custom_call.1} parent=11 // pred_check_branch
          %217 = sbr.rel (%p215) target = $region28
        $region27: #{tpu_custom_call.1} parent=11 // pred_region
          _
        $region28: #{tpu_custom_call.1} parent=11 // pred_fallthru
          _
      $region12: #{tpu_custom_call.1} parent=5 // pred_fallthru
        _
      %p218 = scmp.lt.s32.totalorder %s15, 2
      // Predicated region
      $region29: #{tpu_custom_call.1} parent=5 // pred_check
        %p219 = pneg %p218
      $region30: #{tpu_custom_call.1} parent=5 // pred_check_branch
        %221 = sbr.rel (%p219) target = $region32
      $region31: #{tpu_custom_call.1} parent=5 // pred_region
        // Predicated region
        $region33: #{tpu_custom_call.1} parent=31 // pred_check
          %p222 = pneg %p47
        $region34: #{tpu_custom_call.1} parent=31 // pred_check_branch
          %224 = sbr.rel (%p222) target = $region36
        $region35: #{tpu_custom_call.1} parent=31 // pred_region
          %p225 = scmp.lt.s32.totalorder %s22, 1
          %s226 = scalar_select %p225, %s22, 1
          %s227 = smul.addr %s226, 4
          %s228 = scalar_lea.vmem %s0, %s227
        $region36: #{tpu_custom_call.1} parent=31 // pred_fallthru
          _
        // Predicated region
        $region37: #{tpu_custom_call.1} parent=31 // pred_check
          %p229 = pneg %p73
        $region38: #{tpu_custom_call.1} parent=31 // pred_check_branch
          %231 = sbr.rel (%p229) target = $region40
        $region39: #{tpu_custom_call.1} parent=31 // pred_region
          %p232 = scmp.lt.s32.totalorder %s22, 1
          %s233 = scalar_select %p232, %s22, 1
          %s234 = scalar_lea.vmem %s1, %s233
        $region40: #{tpu_custom_call.1} parent=31 // pred_fallthru
          _
      $region32: #{tpu_custom_call.1} parent=5 // pred_fallthru
        _
      %p235 = scmp.le.s32.totalorder 1, %s15
      %p236 = scmp.lt.s32.totalorder %s15, 3
      %p237 = pnand %p235, %p236
      %p238 = pneg %p237
      // Predicated region
      $region41: #{tpu_custom_call.1} parent=5 // pred_check
        _
      $region42: #{tpu_custom_call.1} parent=5 // pred_check_branch
        %240 = sbr.rel (%p237) target = $region44
      $region43: #{tpu_custom_call.1} parent=5 // pred_region
        %s241 = ssub.s32 %s15, 1
        %p242 = scmp.lt.s32.totalorder %s24, 1
        %s243 = scalar_select %p242, %s24, 1
        %s244 = smul.addr %s243, 4
        %s245 = scalar_lea.vmem %s0, %s244
        %p246 = pneg %p53
        %p247 = pneg %p50
        %p248 = scmp.lt.s32.totalorder %s24, 1
        %s249 = scalar_select %p248, %s24, 1
        %s250 = scalar_lea.vmem %s1, %s249
        %p251 = pneg %p79
        %p252 = pneg %p76
        %p253 = pneg %p100
        %p254 = pneg %p97
        %p255 = pneg %p121
        %p256 = pneg %p118
        %p257 = pneg %p142
        %p258 = pneg %p139
        %p259 = pneg %p163
        %p260 = pneg %p160
        %p261 = pneg %p191
        %p262 = pneg %p188
        %s263 = sand.u32 %s178, 1
        %s264 = scalar_lea.sflag [#allocation4], %s263
        %s265 = sand.u32 %s178, 1
        %s266 = smul.addr %s265, 8
        %s267 = scalar_lea.vmem [#allocation3], %s266
        %p268 = scmp.lt.s32.totalorder %s24, 1
        %s269 = scalar_select %p268, %s24, 1
        %s270 = smul.addr %s269, 4
        %s271 = scalar_lea.vmem %s0, %s270
        %p272 = scmp.lt.s32.totalorder %s24, 1
        %s273 = scalar_select %p272, %s24, 1
        %s274 = scalar_lea.vmem %s1, %s273
        %p276 = scmp.eq.s32.totalorder %s25, 0
        // Predicated region
        $region45: #{tpu_custom_call.1} parent=43 // pred_check
          %p277 = pneg %p276
        $region46: #{tpu_custom_call.1} parent=43 // pred_check_branch
          %279 = sbr.rel (%p277) target = $region48
        $region47: #{tpu_custom_call.1} parent=43 // pred_region
          %v280 = vld [vmem:[%s271] sm:$0xf]
          %v281 = vld [vmem:[%s4] sm:$0xf]
          %v282 = vld [vmem:[%s4 + $0x4] sm:$0xf]
          %v283 = vld [vmem:[%s4 + $0x8] sm:$0xf]
          %v284 = vld [vmem:[%s4 + $0xc] sm:$0xf]
          %v285 = vld [vmem:[%s5] sm:$0x1]
          %v287 = vlaneseq
          %v288 = vshrl.u32 %v287, 7
          %v289 = vsub.s32 0, %v288
          %v290 = vrot.slane %v285, %v289
          %v296 = vunpack.c.l.b16 %v281
          %v297 = vunpack.c.l.b16 %v282
          %v298 = vunpack.c.l.b16 %v283
          %v299 = vunpack.c.l.b16 %v284
          %v300 = vpack.c.b16 %v297, %v296
          %v301 = vpack.c.b16 %v299, %v298
          %vm304 = vcmask 261120
          %v306 = vsel %vm304, %v280, 0
          %308 = vmatprep.subr.bf16.mxu0 0
          %309 = vmatpush1.bf16.msra.mxu0 %v300
          %310 = vmatprep.subr.bf16.mxu0 0
          %311 = vmatpush1.bf16.msra.mxu0 %v301
          %312 = vmatprep.subr.bf16.mxu0 0
          %313 = vmatpush1.bf16.msra.mxu0 0
          %314 = vmatprep.subr.bf16.mxu0 0
          %315 = vmatpush1.bf16.msra.mxu0 0
          %316 = vmatprep.subr.bf16.mxu0 0
          %317 = vmatpush1.bf16.msra.mxu0 0
          %318 = vmatprep.subr.bf16.mxu0 0
          %319 = vmatpush1.bf16.msra.mxu0 0
          %320 = vmatprep.subr.bf16.mxu0 0
          %321 = vmatpush1.bf16.msra.mxu0 0
          %322 = vmatprep.subr.bf16.mxu0 0
          %323 = vmatpush1.bf16.msra.mxu0 0
          %324 = vmatprep.subr.bf16.mxu0 0
          %325 = vmatpush1.bf16.msra.mxu0 0
          %326 = vmatprep.subr.bf16.mxu0 0
          %327 = vmatpush1.bf16.msra.mxu0 0
          %328 = vmatprep.subr.bf16.mxu0 0
          %329 = vmatpush1.bf16.msra.mxu0 0
          %330 = vmatprep.subr.bf16.mxu0 0
          %331 = vmatpush1.bf16.msra.mxu0 0
          %332 = vmatprep.subr.bf16.mxu0 0
          %333 = vmatpush1.bf16.msra.mxu0 0
          %334 = vmatprep.subr.bf16.mxu0 0
          %335 = vmatpush1.bf16.msra.mxu0 0
          %336 = vmatprep.subr.bf16.mxu0 0
          %337 = vmatpush1.bf16.msra.mxu0 0
          %338 = vmatprep.subr.bf16.mxu0 0
          %339 = vmatpush1.bf16.msra.mxu0 0
          %340 = vmatprep.mubr.bf16.mxu0 0
          %341 = vmatmul.mubr.bf16.gmra.mrb[0].mxu0 %v306
          %v342 = vpop.f32.mrb[0].mxu0
          %v343 = vadd.f32 %v290, %v342
          %v344 = vpop.f32.mrb[0].mxu0
          %v345 = vpop.f32.mrb[0].mxu0
          %v346 = vpop.f32.mrb[0].mxu0
          %347 = vdwg.mxu0
          %v348 = vpack.c.bf16 %v343, %v343
          %vm349 = vcmask 125952
          %350 = vst.msk [vmem:[#allocation2] sm:$0xf] %vm349, %v348
        $region48: #{tpu_custom_call.1} parent=43 // pred_fallthru
          _
        %s351 = smul.u32 %s25, 8
        %s352 = sshra.s32 %s351, 3
        %s353 = sand.u32 %s351, 7
        %s354 = smul.addr %s352, 4
        %s355 = scalar_lea.vmem %s271, %s354
        %v356 = vld [vmem:[%s355] sm:$0xf]
        %v357 = vld [vmem:[%s2] sm:$0xf]
        %v358 = vld [vmem:[%s2 + $0x4] sm:$0xf]
        %v359 = vld [vmem:[%s2 + $0x8] sm:$0xf]
        %v360 = vld [vmem:[%s2 + $0xc] sm:$0xf]
        %v361 = vld [vmem:[%s3] sm:$0x1]
        %v363 = vlaneseq
        %v364 = vshrl.u32 %v363, 7
        %v365 = vsub.s32 0, %v364
        %v366 = vrot.slane %v361, %v365
        %v372 = vunpack.c.l.b16 %v357
        %v373 = vunpack.c.l.b16 %v358
        %v374 = vunpack.c.l.b16 %v359
        %v375 = vunpack.c.l.b16 %v360
        %v376 = vpack.c.b16 %v373, %v372
        %v377 = vpack.c.b16 %v375, %v374
        %vm380 = vcmask 261120
        %v382 = vsel %vm380, %v356, 0
        %384 = vmatprep.subr.bf16.mxu0 0
        %385 = vmatpush1.bf16.msra.mxu0 %v376
        %386 = vmatprep.subr.bf16.mxu0 0
        %387 = vmatpush1.bf16.msra.mxu0 %v377
        %388 = vmatprep.subr.bf16.mxu0 0
        %389 = vmatpush1.bf16.msra.mxu0 0
        %390 = vmatprep.subr.bf16.mxu0 0
        %391 = vmatpush1.bf16.msra.mxu0 0
        %392 = vmatprep.subr.bf16.mxu0 0
        %393 = vmatpush1.bf16.msra.mxu0 0
        %394 = vmatprep.subr.bf16.mxu0 0
        %395 = vmatpush1.bf16.msra.mxu0 0
        %396 = vmatprep.subr.bf16.mxu0 0
        %397 = vmatpush1.bf16.msra.mxu0 0
        %398 = vmatprep.subr.bf16.mxu0 0
        %399 = vmatpush1.bf16.msra.mxu0 0
        %400 = vmatprep.subr.bf16.mxu0 0
        %401 = vmatpush1.bf16.msra.mxu0 0
        %402 = vmatprep.subr.bf16.mxu0 0
        %403 = vmatpush1.bf16.msra.mxu0 0
        %404 = vmatprep.subr.bf16.mxu0 0
        %405 = vmatpush1.bf16.msra.mxu0 0
        %406 = vmatprep.subr.bf16.mxu0 0
        %407 = vmatpush1.bf16.msra.mxu0 0
        %408 = vmatprep.subr.bf16.mxu0 0
        %409 = vmatpush1.bf16.msra.mxu0 0
        %410 = vmatprep.subr.bf16.mxu0 0
        %411 = vmatpush1.bf16.msra.mxu0 0
        %412 = vmatprep.subr.bf16.mxu0 0
        %413 = vmatpush1.bf16.msra.mxu0 0
        %414 = vmatprep.subr.bf16.mxu0 0
        %415 = vmatpush1.bf16.msra.mxu0 0
        %416 = vmatprep.mubr.bf16.mxu0 0
        %417 = vmatmul.mubr.bf16.gmra.mrb[0].mxu0 %v382
        %v418 = vpop.f32.mrb[0].mxu0
        %v419 = vadd.f32 %v366, %v418
        %v420 = vpop.f32.mrb[0].mxu0
        %v421 = vpop.f32.mrb[0].mxu0
        %v422 = vpop.f32.mrb[0].mxu0
        %423 = vdwg.mxu0
        %v424 = vld [vmem:[#allocation2] sm:$0xf]
        %v425 = vpack.c.bf16 %v419, %v419
        %vm426 = vcmask 64512
        %v428 = vsel %vm426, %v425, 0
        %v431 = vsel %vm426, %v424, 0
        %433 = vmatprep.subr.bf16.mxu0 0
        %434 = vmatpush1.bf16.xpose.msra.mxu0 %v431
        %435 = vmatprep.subr.bf16.mxu0 0
        %436 = vmatpush1.bf16.xpose.msra.mxu0 0
        %437 = vmatprep.subr.bf16.mxu0 0
        %438 = vmatpush1.bf16.xpose.msra.mxu0 0
        %439 = vmatprep.subr.bf16.mxu0 0
        %440 = vmatpush1.bf16.xpose.msra.mxu0 0
        %441 = vmatprep.subr.bf16.mxu0 0
        %442 = vmatpush1.bf16.xpose.msra.mxu0 0
        %443 = vmatprep.subr.bf16.mxu0 0
        %444 = vmatpush1.bf16.xpose.msra.mxu0 0
        %445 = vmatprep.subr.bf16.mxu0 0
        %446 = vmatpush1.bf16.xpose.msra.mxu0 0
        %447 = vmatprep.subr.bf16.mxu0 0
        %448 = vmatpush1.bf16.xpose.msra.mxu0 0
        %449 = vmatprep.subr.bf16.mxu0 0
        %450 = vmatpush1.bf16.xpose.msra.mxu0 0
        %451 = vmatprep.subr.bf16.mxu0 0
        %452 = vmatpush1.bf16.xpose.msra.mxu0 0
        %453 = vmatprep.subr.bf16.mxu0 0
        %454 = vmatpush1.bf16.xpose.msra.mxu0 0
        %455 = vmatprep.subr.bf16.mxu0 0
        %456 = vmatpush1.bf16.xpose.msra.mxu0 0
        %457 = vmatprep.subr.bf16.mxu0 0
        %458 = vmatpush1.bf16.xpose.msra.mxu0 0
        %459 = vmatprep.subr.bf16.mxu0 0
        %460 = vmatpush1.bf16.xpose.msra.mxu0 0
        %461 = vmatprep.subr.bf16.mxu0 0
        %462 = vmatpush1.bf16.xpose.msra.mxu0 0
        %463 = vmatprep.subr.bf16.mxu0 0
        %464 = vmatpush1.bf16.xpose.msra.mxu0 0
        %465 = vmatprep.mubr.bf16.mxu0 0
        %466 = vmatmul.mubr.bf16.gmra.mrb[0].mxu0 %v428
        %v467 = vpop.f32.mrb[0].mxu0
        %v468 = vadd.f32 0.0, %v467
        %v469 = vpop.f32.mrb[0].mxu0
        %v470 = vpop.f32.mrb[0].mxu0
        %v471 = vpop.f32.mrb[0].mxu0
        %472 = vdwg.mxu0
        %v473 = vmul.f32 %v468, 0.35355338
        %v474 = vld [vmem:[%s274] sm:$0x1]
        %v476 = vlaneseq
        %v477 = vshrl.u32 %v476, 7
        %v478 = vsub.s32 0, %v477
        %v479 = vrot.slane %v474, %v478
        %v481 = vadd.f32 %v473, %v479
        %v482 = vsel %vm426, %v481, -inf
        %483 = vmax.xlane.f32.xlu0 %v482
        %v484 = vpop.xlane.xlu0 %483
        %v485 = vsub.f32 %v481, %v484
        %v486 = vmul.f32 %v485, 1.442695
        %v487 = vpow.pop %v486
        %v488 = vsel %vm426, %v487, 0.0
        %489 = vadd.xlane.f32.xlu0 %v488
        %v490 = vpop.xlane.xlu0 %489
        %v491 = vrcp.pop %v490
        %v492 = vmul.f32 %v487, %v491
        %v493 = vpack.c.bf16 %v492, %v492
        %v495 = vunpack.c.l.b16 %v424
        %v496 = vpack.c.b16 %v495, %v495
        %497 = vrot.lane.b32.xlu0 %v496, 120
        %v498 = vpop.permute.xlu0 %497
        %v500 = vsel %vm426, %v493, 0
        %vm502 = vcmask 1043456
        %v504 = vsel %vm502, %v498, 0
        %506 = vmatprep.subr.bf16.mxu0 0
        %507 = vmatpush1.bf16.msra.mxu0 %v504
        %508 = vmatprep.subr.bf16.mxu0 0
        %509 = vmatpush1.bf16.msra.mxu0 0
        %510 = vmatprep.subr.bf16.mxu0 0
        %511 = vmatpush1.bf16.msra.mxu0 0
        %512 = vmatprep.subr.bf16.mxu0 0
        %513 = vmatpush1.bf16.msra.mxu0 0
        %514 = vmatprep.subr.bf16.mxu0 0
        %515 = vmatpush1.bf16.msra.mxu0 0
        %516 = vmatprep.subr.bf16.mxu0 0
        %517 = vmatpush1.bf16.msra.mxu0 0
        %518 = vmatprep.subr.bf16.mxu0 0
        %519 = vmatpush1.bf16.msra.mxu0 0
        %520 = vmatprep.subr.bf16.mxu0 0
        %521 = vmatpush1.bf16.msra.mxu0 0
        %522 = vmatprep.subr.bf16.mxu0 0
        %523 = vmatpush1.bf16.msra.mxu0 0
        %524 = vmatprep.subr.bf16.mxu0 0
        %525 = vmatpush1.bf16.msra.mxu0 0
        %526 = vmatprep.subr.bf16.mxu0 0
        %527 = vmatpush1.bf16.msra.mxu0 0
        %528 = vmatprep.subr.bf16.mxu0 0
        %529 = vmatpush1.bf16.msra.mxu0 0
        %530 = vmatprep.subr.bf16.mxu0 0
        %531 = vmatpush1.bf16.msra.mxu0 0
        %532 = vmatprep.subr.bf16.mxu0 0
        %533 = vmatpush1.bf16.msra.mxu0 0
        %534 = vmatprep.subr.bf16.mxu0 0
        %535 = vmatpush1.bf16.msra.mxu0 0
        %536 = vmatprep.subr.bf16.mxu0 0
        %537 = vmatpush1.bf16.msra.mxu0 0
        %538 = vmatprep.mubr.bf16.mxu0 0
        %539 = vmatmul.mubr.bf16.gmra.mrb[0].mxu0 %v500
        %v540 = vpop.f32.mrb[0].mxu0
        %v541 = vadd.f32 0.0, %v540
        %v542 = vpop.f32.mrb[0].mxu0
        %v543 = vpop.f32.mrb[0].mxu0
        %v544 = vpop.f32.mrb[0].mxu0
        %545 = vdwg.mxu0
        %546 = vst.msk [vmem:[%s267] sm:$0xff] %vm426, %v541
        %s547 = sand.u32 %s178, 1
        %s548 = scalar_lea.sflag [#allocation4], %s547
        %s549 = sand.u32 %s178, 1
        %s550 = smul.addr %s549, 8
        %s551 = scalar_lea.vmem [#allocation3], %s550
        // Predicated region
        $region49: #{tpu_custom_call.1} parent=43 // pred_check
          %p552 = pneg %p188
        $region50: #{tpu_custom_call.1} parent=43 // pred_check_branch
          %554 = sbr.rel (%p552) target = $region52
        $region51: #{tpu_custom_call.1} parent=43 // pred_region
          %s556 = ssub.s32 128, 128
          %557 = vsyncadd %s548, %s556
          %s558 = sadd.s32 %s25, %s24
          %s559 = smul.addr %s558, 128
          %s560 = scalar_lea.hbm %s6, %s559
          %s562 = sshll.u32 %s551, 4
          %s563 = int_to_ptr.vmem [resolvable:$true] %s562
          %565 = dma.vmem_to_hbm [thread:$0]  %s563, 128, %s560, %s548
        $region52: #{tpu_custom_call.1} parent=43 // pred_fallthru
          _
      $region44: #{tpu_custom_call.1} parent=5 // pred_fallthru
        _
      %p566 = scmp.le.s32.totalorder 2, %s15
      // Predicated region
      $region53: #{tpu_custom_call.1} parent=5 // pred_check
        %p567 = pneg %p566
      $region54: #{tpu_custom_call.1} parent=5 // pred_check_branch
        %569 = sbr.rel (%p567) target = $region56
      $region55: #{tpu_custom_call.1} parent=5 // pred_region
        %s570 = ssub.s32 %s15, 2
        // Predicated region
        $region57: #{tpu_custom_call.1} parent=55 // pred_check
          %p571 = pneg %p194
        $region58: #{tpu_custom_call.1} parent=55 // pred_check_branch
          %573 = sbr.rel (%p571) target = $region60
        $region59: #{tpu_custom_call.1} parent=55 // pred_region
          %s574 = sand.u32 %s179, 1
          %s575 = scalar_lea.sflag [#allocation4], %s574
          %s576 = sand.u32 %s179, 1
          %s577 = smul.addr %s576, 8
          %s578 = scalar_lea.vmem [#allocation3], %s577
          %579 = dma.done %s575, 128
        $region60: #{tpu_custom_call.1} parent=55 // pred_fallthru
          _
      $region56: #{tpu_custom_call.1} parent=5 // pred_fallthru
        _
    $region6: #{tpu_custom_call.1} parent=1 // loop_footer
      %s19 = sadd.s32 1, %s15
    $region7: #{tpu_custom_call.1} parent=1 // loop_footer_branch
      %14 = sbr.rel target = $region3
    $region8: #{tpu_custom_call.1} parent=1 // loop_exit
      _
    %580 = vsyncpa [#allocation4], 1
    %s581 = scalar_lea.sflag [#allocation4], 1
    %582 = vsyncpa %s581, 1

</llo_original>
